<compile_context>
chip_gen: v7x
topology: tpu7x:2x2x1
jax: 0.10.0
libtpu: 0.0.40
codegen_flags: <defaults>
</compile_context>

<pallas_src>
import functools

import jax
import jax.numpy as jnp
from jax.experimental import pallas as pl
from jax.experimental.pallas import tpu as pltpu

EPS = 1e-5
_MIB = 1024 * 1024


def _cdiv(a, b):
    return -(-a // b)


def _round_up(x, m):
    return _cdiv(x, m) * m


def _device_kind():
    try:
        return jax.devices()[0].device_kind.lower()
    except Exception:
        return ""


def _tpu_tuning(kind):
    """(block_budget_bytes, vmem_limit_cap_bytes, has_bf16_valu)."""
    if "v7" in kind:
        # 2x HBM BW vs v6e -> bigger blocks amortize the ~0.35us/step overhead,
        # but only 64 MiB physical VMEM per TC.
        return 5 * _MIB, 56 * _MIB, True
    if "v6" in kind:
        return 6 * _MIB, 100 * _MIB, True
    # v5e / v5p / v4 / unknown: conservative blocks, no bf16 VALU assumed,
    # but still set an explicit (non-default) scoped VMEM limit.
    return 2 * _MIB, 64 * _MIB, False


# ----------------------------------------------------------------------------
# Fast path: fused single-pass kernel (full N and HW per channel slice).
# ----------------------------------------------------------------------------
def _bn_fused_kernel(w0_ref, w1_ref, x_ref, gamma_ref, beta_ref, o_ref,
                     *, c_tile, sub_align, inv_count, native_apply):
    # x_ref: (N, c_tile, HW) native dtype; gamma/beta: (1, C_pad, 1) f32 resident.
    ci = pl.program_id(0)
    x = x_ref[...]
    xf = x.astype(jnp.float32)

    # Single-pass per-channel batch stats (biased variance, like BN forward).
    s1 = jnp.sum(xf, axis=(0, 2), keepdims=True)              # (1, c_tile, 1)
    s2 = jnp.sum(xf * xf, axis=(0, 2), keepdims=True)
    mean = s1 * inv_count
    var = s2 * inv_count - mean * mean
    inv_std = jax.lax.rsqrt(var + EPS)

    # gamma/beta stay resident in VMEM for the whole grid; slice our channel
    # tile (start is c_tile-aligned, c_tile is sublane-aligned).
    if gamma_ref.shape[1] == c_tile:
        gamma = gamma_ref[...]
        beta = beta_ref[...]
    else:
        start = pl.multiple_of(ci * c_tile, sub_align)
        gamma = gamma_ref[:, pl.ds(start, c_tile), :]
        beta = beta_ref[:, pl.ds(start, c_tile), :]

    w0 = w0_ref[0]
    w1 = w1_ref[0]

    # Fold BN affine + w0/w1 mix into one per-channel scale/shift.
    g_inv = gamma * inv_std
    scale = w0 + w1 * g_inv                                   # (1, c_tile, 1)
    shift = w1 * (beta - g_inv * mean)

    if native_apply:
        # bf16 VALU (v6e/v7x): apply on the native-dtype x -> half the vreg
        # traffic on the big per-element pass, no f32 pre-cast result temp.
        o_ref[...] = x * scale.astype(x.dtype) + shift.astype(x.dtype)
    else:
        o_ref[...] = (xf * scale + shift).astype(o_ref.dtype)


# ----------------------------------------------------------------------------
# Split path (large N*HW per channel): stats kernel + apply kernel.
# ----------------------------------------------------------------------------
def _bn_stats_kernel(x_ref, s1_ref, s2_ref, *, hw_total, hw_tile, mask_hw):
    # grid = (channel tiles [parallel], HW tiles [arbitrary, reduction last]).
    hj = pl.program_id(1)

    @pl.when(hj == 0)
    def _():
        s1_ref[...] = jnp.zeros_like(s1_ref)
        s2_ref[...] = jnp.zeros_like(s2_ref)

    xf = x_ref[...].astype(jnp.float32)                       # (N, ct, hw_tile)
    if mask_hw:
        col = jax.lax.broadcasted_iota(jnp.int32, xf.shape, 2) + hj * hw_tile
        xf = jnp.where(col < hw_total, xf, 0.0)
    s1_ref[...] += jnp.sum(xf, axis=(0, 2), keepdims=True)
    s2_ref[...] += jnp.sum(xf * xf, axis=(0, 2), keepdims=True)


def _bn_apply_kernel(x_ref, scale_ref, shift_ref, o_ref, *, native_apply):
    x = x_ref[...]
    scale = scale_ref[...]
    shift = shift_ref[...]
    if native_apply:
        o_ref[...] = x * scale.astype(x.dtype) + shift.astype(x.dtype)
    else:
        o_ref[...] = (x.astype(jnp.float32) * scale + shift).astype(o_ref.dtype)


# ----------------------------------------------------------------------------
# Wrapper
# ----------------------------------------------------------------------------
def batchnorm_module(x_nchw, w0, w1, gamma, beta,
                     *, _force_split=False, _force_block_budget=None):
    """Forward pass of BatchNorm_: w0 * x + w1 * BatchNorm2d(x) (batch stats)."""
    N, C, H, W = x_nchw.shape
    HW = H * W
    x_r = x_nchw.reshape(N, C, HW)                 # free reshape, no transpose
    dtype = x_r.dtype
    itemsize = jnp.dtype(dtype).itemsize

    kind = _device_kind()
    block_budget, vmem_cap, bf16_valu = _tpu_tuning(kind)
    if _force_block_budget is not None:
        block_budget = int(_force_block_budget)
    native_apply = bool(bf16_valu and dtype == jnp.bfloat16)

    # Packed sublane tile of the input dtype (f32: 8, bf16: 16, int8/fp8: 32).
    sub_align = {4: 8, 2: 16, 1: 32}.get(itemsize, 8)

    gamma_f = gamma.reshape(1, C, 1).astype(jnp.float32)
    beta_f = beta.reshape(1, C, 1).astype(jnp.float32)
    w0_s = jnp.asarray(w0, jnp.float32).reshape(1)
    w1_s = jnp.asarray(w1, jnp.float32).reshape(1)

    inv_count = 1.0 / float(N * HW)
    bytes_per_channel = max(1, N * HW * itemsize)
    c_fit = block_budget // bytes_per_channel
    min_c_block = min(C, sub_align)

    use_split = _force_split or (c_fit < min_c_block)

    if not use_split:
        # ------------------------- fused fast path --------------------------
        if c_fit >= C:
            c_tile = C
            # Ensure >= 2 grid steps where alignment allows, so v7x's two TCs
            # both get work and the DMA pipeline can overlap.
            if C >= 2 * sub_align:
                cand = _round_up(_cdiv(C, 2), sub_align)
                if cand < C:
                    c_tile = cand
        else:
            c_tile = max(sub_align, (c_fit // sub_align) * sub_align)

        grid_c = _cdiv(C, c_tile)
        c_pad = grid_c * c_tile
        if c_pad != C:
            pad = c_pad - C
            gamma_res = jnp.pad(gamma_f, ((0, 0), (0, pad), (0, 0)),
                                constant_values=1.0)
            beta_res = jnp.pad(beta_f, ((0, 0), (0, pad), (0, 0)))
        else:
            gamma_res, beta_res = gamma_f, beta_f

        # True live-VMEM estimate: double-buffered in + out blocks (native
        # dtype) plus f32 temporaries (xf, x*x; + pre-cast result if f32 apply).
        blk_elems = N * c_tile * HW
        n_f32_temps = 2 if native_apply else 3
        live_est = 4 * blk_elems * itemsize + n_f32_temps * blk_elems * 4 + 2 * _MIB
        vmem_limit = int(min(vmem_cap, max(32 * _MIB, live_est)))

        kernel = functools.partial(
            _bn_fused_kernel, c_tile=c_tile, sub_align=sub_align,
            inv_count=inv_count, native_apply=native_apply)

        out_r = pl.pallas_call(
            kernel,
            out_shape=jax.ShapeDtypeStruct((N, C, HW), dtype),
            grid_spec=pltpu.PrefetchScalarGridSpec(
                num_scalar_prefetch=0,
                grid=(grid_c,),
                in_specs=[
                    pl.BlockSpec(memory_space=pltpu.MemorySpace.SMEM),     # w0
                    pl.BlockSpec(memory_space=pltpu.MemorySpace.SMEM),     # w1
                    pl.BlockSpec((N, c_tile, HW), lambda i: (0, i, 0)),    # x
                    pl.BlockSpec((1, c_pad, 1), lambda i: (0, 0, 0)),      # gamma (resident)
                    pl.BlockSpec((1, c_pad, 1), lambda i: (0, 0, 0)),      # beta  (resident)
                ],
                out_specs=pl.BlockSpec((N, c_tile, HW), lambda i: (0, i, 0)),
            ),
            compiler_params=pltpu.CompilerParams(
                dimension_semantics=("parallel",),
                vmem_limit_bytes=vmem_limit),
        )(w0_s, w1_s, x_r, gamma_res, beta_res)
        return out_r.reshape(N, C, H, W)

    # --------------------------- HW-split path ------------------------------
    c_tile = min(C, sub_align)
    per_col_bytes = max(1, N * c_tile * itemsize)
    ht_fit = max(1, block_budget // per_col_bytes)
    if HW <= 128 or ht_fit >= HW:
        hw_tile = HW                                  # full extent (always legal)
    else:
        hw_tile = max(128, (ht_fit // 128) * 128)     # lane-aligned tile
        hw_tile = min(hw_tile, (HW // 128) * 128)

    grid_c = _cdiv(C, c_tile)
    grid_h = _cdiv(HW, hw_tile)
    mask_hw = (HW % hw_tile) != 0

    xblk = N * c_tile * hw_tile
    stats_live = 2 * xblk * itemsize + 2 * xblk * 4 + 2 * _MIB
    apply_live = 4 * xblk * itemsize + (0 if native_apply else 2 * xblk * 4) + 2 * _MIB
    vmem_stats = int(min(vmem_cap, max(32 * _MIB, stats_live)))
    vmem_apply = int(min(vmem_cap, max(32 * _MIB, apply_live)))

    # Pass 1: per-channel s1 / s2 accumulated in resident output blocks.
    stats_kernel = functools.partial(
        _bn_stats_kernel, hw_total=HW, hw_tile=hw_tile, mask_hw=mask_hw)
    s1, s2 = pl.pallas_call(
        stats_kernel,
        out_shape=(jax.ShapeDtypeStruct((1, C, 1), jnp.float32),
                   jax.ShapeDtypeStruct((1, C, 1), jnp.float32)),
        grid_spec=pltpu.PrefetchScalarGridSpec(
            num_scalar_prefetch=0,
            grid=(grid_c, grid_h),
            in_specs=[pl.BlockSpec((N, c_tile, hw_tile), lambda i, j: (0, i, j))],
            out_specs=[pl.BlockSpec((1, c_tile, 1), lambda i, j: (0, i, 0)),
                       pl.BlockSpec((1, c_tile, 1), lambda i, j: (0, i, 0))],
        ),
        compiler_params=pltpu.CompilerParams(
            dimension_semantics=("parallel", "arbitrary"),
            vmem_limit_bytes=vmem_stats),
    )(x_r)

    # Tiny host-side fold (C floats): BN affine + w0/w1 mix -> scale/shift.
    mean = s1 * inv_count
    var = s2 * inv_count - mean * mean
    inv_std = jax.lax.rsqrt(var + EPS)
    g_inv = gamma_f * inv_std
    w0f = jnp.asarray(w0, jnp.float32).reshape(1, 1, 1)
    w1f = jnp.asarray(w1, jnp.float32).reshape(1, 1, 1)
    scale = w0f + w1f * g_inv                                  # (1, C, 1)
    shift = w1f * (beta_f - g_inv * mean)

    # Pass 2: elementwise apply.
    apply_kernel = functools.partial(_bn_apply_kernel, native_apply=native_apply)
    out_r = pl.pallas_call(
        apply_kernel,
        out_shape=jax.ShapeDtypeStruct((N, C, HW), dtype),
        grid_spec=pltpu.PrefetchScalarGridSpec(
            num_scalar_prefetch=0,
            grid=(grid_c, grid_h),
            in_specs=[
                pl.BlockSpec((N, c_tile, hw_tile), lambda i, j: (0, i, j)),  # x
                pl.BlockSpec((1, c_tile, 1), lambda i, j: (0, i, 0)),        # scale
                pl.BlockSpec((1, c_tile, 1), lambda i, j: (0, i, 0)),        # shift
            ],
            out_specs=pl.BlockSpec((N, c_tile, hw_tile), lambda i, j: (0, i, j)),
        ),
        compiler_params=pltpu.CompilerParams(
            dimension_semantics=("parallel", "parallel"),
            vmem_limit_bytes=vmem_apply),
    )(x_r, scale, shift)
    return out_r.reshape(N, C, H, W)


def _reference(x, w0, w1, gamma, beta):
    # Pure-JAX reference of the PyTorch forward (batch stats, biased variance).
    xf = x.astype(jnp.float32)
    mean = jnp.mean(xf, axis=(0, 2, 3), keepdims=True)
    var = jnp.mean((xf - mean) ** 2, axis=(0, 2, 3), keepdims=True)
    x_hat = (xf - mean) / jnp.sqrt(var + EPS)
    bn = gamma.reshape(1, -1, 1, 1) * x_hat + beta.reshape(1, -1, 1, 1)
    return (w0 * xf + w1 * bn).astype(x.dtype)


if __name__ == "__main__":
    key = jax.random.PRNGKey(0)

    # Module parameters (shapes from __init__): w0 (1,), w1 (1,), gamma/beta (C,).
    # Defaults are w0=1, w1=0, gamma=1, beta=0; use nontrivial deterministic
    # values so the BN path is exercised.
    w0 = jnp.float32(1.0)
    w1 = jnp.float32(0.5)

    # Test 1: fused fast path at the module's natural small shape.
    N, C, H, W = 2, 4, 16, 16
    x = jax.random.normal(key, (N, C, H, W), dtype=jnp.float32)
    gamma = 1.0 + 0.1 * jnp.arange(C, dtype=jnp.float32)
    beta = 0.05 * jnp.arange(C, dtype=jnp.float32)
    out = jax.block_until_ready(batchnorm_module(x, w0, w1, gamma, beta))
    ref = _reference(x, w0, w1, gamma, beta)
    assert out.shape == (N, C, H, W)
    assert jnp.allclose(out, ref, atol=1e-4, rtol=1e-4), "fused path mismatch"

    # Test 2: HW-split two-pass path (stats + apply), partial HW tile masking,
    # forced via a tiny block budget so it runs even at small shapes.
    N2, C2, H2, W2 = 2, 4, 12, 12
    x2 = jax.random.normal(jax.random.PRNGKey(1), (N2, C2, H2, W2), jnp.float32)
    g2 = 1.0 + 0.1 * jnp.arange(C2, dtype=jnp.float32)
    b2 = 0.05 * jnp.arange(C2, dtype=jnp.float32)
    out2 = jax.block_until_ready(
        batchnorm_module(x2, w0, w1, g2, b2,
                         _force_split=True, _force_block_budget=4096))
    ref2 = _reference(x2, w0, w1, g2, b2)
    assert jnp.allclose(out2, ref2, atol=1e-4, rtol=1e-4), "split path mismatch"

    # Test 3: fused path with a multi-step channel grid, partial last channel
    # block and padded resident gamma/beta.
    N3, C3, H3, W3 = 2, 20, 8, 8
    x3 = jax.random.normal(jax.random.PRNGKey(2), (N3, C3, H3, W3), jnp.float32)
    g3 = 1.0 + 0.05 * jnp.arange(C3, dtype=jnp.float32)
    b3 = 0.02 * jnp.arange(C3, dtype=jnp.float32)
    out3 = jax.block_until_ready(
        batchnorm_module(x3, w0, w1, g3, b3, _force_block_budget=4096))
    ref3 = _reference(x3, w0, w1, g3, b3)
    assert jnp.allclose(out3, ref3, atol=1e-4, rtol=1e-4), "tiled path mismatch"

    print("KERNEL_OK")
</pallas_src>

<mosaic_0001>
module attributes {stable_mosaic.version = 11 : i64} {
  func.func @_bn_fused_kernel(%arg0: i32, %arg1: memref<1xf32, #tpu.memory_space<smem>>, %arg2: memref<1xf32, #tpu.memory_space<smem>>, %arg3: memref<2x4x256xf32, #tpu.memory_space<vmem>>, %arg4: memref<1x4x1xf32, #tpu.memory_space<vmem>>, %arg5: memref<1x4x1xf32, #tpu.memory_space<vmem>>, %arg6: memref<2x4x256xf32, #tpu.memory_space<vmem>>) attributes {dimension_semantics = [#tpu.dimension_semantics<parallel>], iteration_bounds = array<i64: 1>, scalar_prefetch = 0 : i64, scratch_operands = 0 : i64, tpu.core_type = #tpu.core_type<tc>, window_params = [{transform_indices = @transform_0, window_bounds = array<i64: 1>}, {transform_indices = @transform_1, window_bounds = array<i64: 1>}, {transform_indices = @transform_2, window_bounds = array<i64: 2, 4, 256>}, {pipeline_mode = #tpu.pipeline_mode<synchronous>, transform_indices = @transform_3, window_bounds = array<i64: 1, 4, 1>}, {pipeline_mode = #tpu.pipeline_mode<synchronous>, transform_indices = @transform_4, window_bounds = array<i64: 1, 4, 1>}, {transform_indices = @transform_5, window_bounds = array<i64: 2, 4, 256>}]} {
    %c0 = arith.constant 0 : index
    %c0_0 = arith.constant 0 : index
    %c0_1 = arith.constant 0 : index
    %0 = vector.load %arg3[%c0, %c0_0, %c0_1] : memref<2x4x256xf32, #tpu.memory_space<vmem>>, vector<2x4x256xf32>
    %cst = arith.constant dense<0.000000e+00> : vector<4xf32>
    %1 = vector.multi_reduction <add>, %0, %cst [0, 2] : vector<2x4x256xf32> to vector<4xf32>
    %2 = vector.shape_cast %1 : vector<4xf32> to vector<1x4x1xf32>
    %3 = arith.mulf %0, %0 : vector<2x4x256xf32>
    %cst_2 = arith.constant dense<0.000000e+00> : vector<4xf32>
    %4 = vector.multi_reduction <add>, %3, %cst_2 [0, 2] : vector<2x4x256xf32> to vector<4xf32>
    %5 = vector.shape_cast %4 : vector<4xf32> to vector<1x4x1xf32>
    %cst_3 = arith.constant 0.001953125 : f32
    %6 = vector.broadcast %cst_3 : f32 to vector<1x4x1xf32>
    %7 = arith.mulf %2, %6 : vector<1x4x1xf32>
    %cst_4 = arith.constant 0.001953125 : f32
    %8 = vector.broadcast %cst_4 : f32 to vector<1x4x1xf32>
    %9 = arith.mulf %5, %8 : vector<1x4x1xf32>
    %10 = arith.mulf %7, %7 : vector<1x4x1xf32>
    %11 = arith.subf %9, %10 : vector<1x4x1xf32>
    %cst_5 = arith.constant 9.99999974E-6 : f32
    %12 = vector.broadcast %cst_5 : f32 to vector<1x4x1xf32>
    %13 = arith.addf %11, %12 : vector<1x4x1xf32>
    %14 = math.rsqrt %13 : vector<1x4x1xf32>
    %c0_6 = arith.constant 0 : index
    %c0_7 = arith.constant 0 : index
    %c0_8 = arith.constant 0 : index
    %15 = vector.load %arg4[%c0_6, %c0_7, %c0_8] : memref<1x4x1xf32, #tpu.memory_space<vmem>>, vector<1x4x1xf32>
    %c0_9 = arith.constant 0 : index
    %c0_10 = arith.constant 0 : index
    %c0_11 = arith.constant 0 : index
    %16 = vector.load %arg5[%c0_9, %c0_10, %c0_11] : memref<1x4x1xf32, #tpu.memory_space<vmem>>, vector<1x4x1xf32>
    %c0_12 = arith.constant 0 : index
    %17 = memref.load %arg1[%c0_12] : memref<1xf32, #tpu.memory_space<smem>>
    %c0_13 = arith.constant 0 : index
    %18 = memref.load %arg2[%c0_13] : memref<1xf32, #tpu.memory_space<smem>>
    %19 = arith.mulf %15, %14 : vector<1x4x1xf32>
    %20 = vector.broadcast %18 : f32 to vector<1x4x1xf32>
    %21 = arith.mulf %20, %19 : vector<1x4x1xf32>
    %22 = vector.broadcast %17 : f32 to vector<1x4x1xf32>
    %23 = arith.addf %22, %21 : vector<1x4x1xf32>
    %24 = arith.mulf %19, %7 : vector<1x4x1xf32>
    %25 = arith.subf %16, %24 : vector<1x4x1xf32>
    %26 = vector.broadcast %18 : f32 to vector<1x4x1xf32>
    %27 = arith.mulf %26, %25 : vector<1x4x1xf32>
    %28 = vector.broadcast %23 : vector<1x4x1xf32> to vector<2x4x256xf32>
    %29 = arith.mulf %0, %28 : vector<2x4x256xf32>
    %30 = vector.broadcast %27 : vector<1x4x1xf32> to vector<2x4x256xf32>
    %31 = arith.addf %29, %30 : vector<2x4x256xf32>
    %c0_14 = arith.constant 0 : index
    %c0_15 = arith.constant 0 : index
    %c0_16 = arith.constant 0 : index
    %32 = vector.load %arg6[%c0_14, %c0_15, %c0_16] : memref<2x4x256xf32, #tpu.memory_space<vmem>>, vector<2x4x256xf32>
    tpu.vector_store %arg6[%c0_14, %c0_15, %c0_16], %31 {strides = array<i32>} : memref<2x4x256xf32, #tpu.memory_space<vmem>>, vector<2x4x256xf32>,
    return
  }
  func.func @transform_0(%arg0: i32) -> i32 {
    %c0_i32 = arith.constant 0 : i32
    %c0_i32_0 = arith.constant 0 : i32
    return %c0_i32 : i32
  }
  func.func @transform_1(%arg0: i32) -> i32 {
    %c0_i32 = arith.constant 0 : i32
    %c0_i32_0 = arith.constant 0 : i32
    return %c0_i32 : i32
  }
  func.func @transform_2(%arg0: i32) -> (i32, i32, i32) {
    %c0_i32 = arith.constant 0 : i32
    %c0_i32_0 = arith.constant 0 : i32
    %c0_i32_1 = arith.constant 0 : i32
    return %c0_i32, %arg0, %c0_i32_0 : i32, i32, i32
  }
  func.func @transform_3(%arg0: i32) -> (i32, i32, i32) {
    %c0_i32 = arith.constant 0 : i32
    %c0_i32_0 = arith.constant 0 : i32
    %c0_i32_1 = arith.constant 0 : i32
    %c0_i32_2 = arith.constant 0 : i32
    return %c0_i32, %c0_i32_0, %c0_i32_1 : i32, i32, i32
  }
  func.func @transform_4(%arg0: i32) -> (i32, i32, i32) {
    %c0_i32 = arith.constant 0 : i32
    %c0_i32_0 = arith.constant 0 : i32
    %c0_i32_1 = arith.constant 0 : i32
    %c0_i32_2 = arith.constant 0 : i32
    return %c0_i32, %c0_i32_0, %c0_i32_1 : i32, i32, i32
  }
  func.func @transform_5(%arg0: i32) -> (i32, i32, i32) {
    %c0_i32 = arith.constant 0 : i32
    %c0_i32_0 = arith.constant 0 : i32
    %c0_i32_1 = arith.constant 0 : i32
    return %c0_i32, %arg0, %c0_i32_0 : i32, i32, i32
  }
}

</mosaic_0001>

<llo_original>
// kernel: tpu_custom_call.1
$region0: #{tpu_custom_call.1}
  #allocation0 [shape = 'u32[]', space=smem, size = 0x4, offset = 0x4, fixed_abs, tag = 'smem constant byte address 0x4 - core index']
  #allocation1 [shape = 'u32[144,128]{1,0:T(1,128)}', space=vmem, size = 0x12000, scoped, tag = 'internal scratch']
  #allocation2 [shape = 'f32[1]{0:T(128)S(6)}', space=smem, size = 0x200, scoped, tag = 'scoped memory for tpu_custom_call.1']
  #allocation3 [shape = 'f32[1]{0:T(128)S(6)}', space=smem, size = 0x200, scoped, tag = 'scoped memory for tpu_custom_call.1']
  %s0 = inlined_call_operand.<no memory space> [shape: f32[1], index: 0, kind: input, shape index: {}]
  %s1 = inlined_call_operand.<no memory space> [shape: f32[1], index: 1, kind: input, shape index: {}]
  %s2 = inlined_call_operand.vmem [shape: f32[2,4,256], index: 2, kind: input, shape index: {}]
  %s3 = inlined_call_operand.vmem [shape: f32[1,4,1], index: 3, kind: input, shape index: {}]
  %s4 = inlined_call_operand.vmem [shape: f32[1,4,1], index: 4, kind: input, shape index: {}]
  %s5 = inlined_call_operand.hbm [shape: f32[2,4,256], index: 5, kind: output, shape index: {}]
  %s6 = sld [smem:[#allocation0]]
  $region30: #{tpu_custom_call.1} parent=0
    _
  %s8 = ssub.s32 1, %s6
  %s9 = scalar_select 0, %s8, %s6
  %10 = sst [smem:[#allocation2]] %s0
  %11 = sst [smem:[#allocation3]] %s1
  $region1: #{tpu_custom_call.1} parent=0
    #allocation4 [shape = 'u8[8192]{0}', space=vmem, size = 0x2000, scoped, tag = 'output window, operand 0, single buffered']
    #allocation5 [shape = 's32[1]{0}', space=sflag, size = 0x4, scoped, tag = 'scoped memory for tpu_custom_call.1']
    %12 = vsyncpa [#allocation5], 0
    // Predicated region
    $region2: #{tpu_custom_call.1} parent=1 // pred_check
      _
    $region3: #{tpu_custom_call.1} parent=1 // pred_check_branch
      %14 = sbr.rel (0) target = $region5
    $region4: #{tpu_custom_call.1} parent=1 // pred_region
      _
    $region5: #{tpu_custom_call.1} parent=1 // pred_fallthru
      _
    // Predicated region
    $region6: #{tpu_custom_call.1} parent=1 // pred_check
      _
    $region7: #{tpu_custom_call.1} parent=1 // pred_check_branch
      %16 = sbr.rel (0) target = $region9
    $region8: #{tpu_custom_call.1} parent=1 // pred_region
      _
    $region9: #{tpu_custom_call.1} parent=1 // pred_fallthru
      _
    // Predicated region
    $region10: #{tpu_custom_call.1} parent=1 // pred_check
      _
    $region11: #{tpu_custom_call.1} parent=1 // pred_check_branch
      %18 = sbr.rel (0) target = $region13
    $region12: #{tpu_custom_call.1} parent=1 // pred_region
      _
    $region13: #{tpu_custom_call.1} parent=1 // pred_fallthru
      _
    // Predicated region
    $region14: #{tpu_custom_call.1} parent=1 // pred_check
      _
    $region15: #{tpu_custom_call.1} parent=1 // pred_check_branch
      %20 = sbr.rel (0) target = $region17
    $region16: #{tpu_custom_call.1} parent=1 // pred_region
      _
    $region17: #{tpu_custom_call.1} parent=1 // pred_fallthru
      _
    // Predicated region
    $region18: #{tpu_custom_call.1} parent=1 // pred_check
      _
    $region19: #{tpu_custom_call.1} parent=1 // pred_check_branch
      %22 = sbr.rel (0) target = $region21
    $region20: #{tpu_custom_call.1} parent=1 // pred_region
      _
    $region21: #{tpu_custom_call.1} parent=1 // pred_fallthru
      _
    %v23 = vld [vmem:[%s2] sm:$0xff]
    %v24 = vld [vmem:[%s2 + $0x8] sm:$0xff]
    %v27 = vcombine.high %v23, %v23
    %v28 = vcombine.high %v24, %v24
    %vm31 = vcmask 1043456
    %v32 = vsel %vm31, %v23, 0.0
    %v33 = vsel %vm31, %v27, 0.0
    %v34 = vadd.f32 %v32, %v33
    %v35 = vsel %vm31, %v24, 0.0
    %v36 = vadd.f32 %v34, %v35
    %v37 = vsel %vm31, %v28, 0.0
    %v38 = vadd.f32 %v36, %v37
    %39 = vadd.xlane.f32.xlu0 %v38
    %v40 = vpop.xlane.xlu0 %39
    %v41 = vmul.f32 %v23, %v23
    %v42 = vmul.f32 %v24, %v24
    %v45 = vcombine.high %v41, %v41
    %v46 = vcombine.high %v42, %v42
    %v49 = vsel %vm31, %v41, 0.0
    %v50 = vsel %vm31, %v45, 0.0
    %v51 = vadd.f32 %v49, %v50
    %v52 = vsel %vm31, %v42, 0.0
    %v53 = vadd.f32 %v51, %v52
    %v54 = vsel %vm31, %v46, 0.0
    %v55 = vadd.f32 %v53, %v54
    %56 = vadd.xlane.f32.xlu0 %v55
    %v57 = vpop.xlane.xlu0 %56
    %v58 = vmul.f32 %v40, 0.001953125
    %v59 = vmul.f32 %v57, 0.001953125
    %v60 = vmul.f32 %v58, %v58
    %v61 = vsub.f32 %v59, %v60
    %v62 = vadd.f32 %v61, 1e-05
    %v63 = vrsqrt.pop %v62
    %v64 = vld [vmem:[%s3] sm:$0xf]
    %v65 = vld [vmem:[%s4] sm:$0xf]
    %s66 = sld [smem:[#allocation2]]
    %s67 = sld [smem:[#allocation3]]
    %v68 = vmul.f32 %v64, %v63
    %v69 = vstv %s67
    %v70 = vmul.f32 %v69, %v68
    %v71 = vstv %s66
    %v72 = vadd.f32 %v71, %v70
    %v73 = vmul.f32 %v68, %v58
    %v74 = vsub.f32 %v65, %v73
    %v75 = vmul.f32 %v69, %v74
    %77 = vset.pattern.permute.xlu0 0
    %78 = vperm.xlu0 %77, %v72
    %v79 = vpop.permute.xlu0 %78
    %v81 = vunpack.c.l.s4 839922192
    %v82 = vunpack.c.0.s8 %v81
    %v83 = vlaneseq
    %v84 = vshrl.u32 %v83, 7
    %v85 = vsub.s32 %v82, %v84
    %v86 = vrot.slane %v79, %v85
    %v88 = vmul.f32 %v23, %v86
    %v89 = vmul.f32 %v24, %v86
    %91 = vset.pattern.permute.xlu0 0
    %92 = vperm.xlu0 %91, %v75
    %v93 = vpop.permute.xlu0 %92
    %v95 = vunpack.c.l.s4 839922192
    %v96 = vunpack.c.0.s8 %v95
    %v97 = vlaneseq
    %v98 = vshrl.u32 %v97, 7
    %v99 = vsub.s32 %v96, %v98
    %v100 = vrot.slane %v93, %v99
    %v102 = vadd.f32 %v88, %v100
    %v103 = vadd.f32 %v89, %v100
    %104 = vst [vmem:[#allocation4] sm:$0xff] %v102
    %105 = vst [vmem:[#allocation4 + $0x8] sm:$0xff] %v103
    // Predicated region
    $region22: #{tpu_custom_call.1} parent=1 // pred_check
      _
    $region23: #{tpu_custom_call.1} parent=1 // pred_check_branch
      %107 = sbr.rel (0) target = $region25
    $region24: #{tpu_custom_call.1} parent=1 // pred_region
      %s109 = ssub.s32 256, 256
      %110 = vsyncadd [#allocation5], %s109
      %s111 = sshll.u32 [#allocation4], 4
      %s112 = int_to_ptr.vmem [resolvable:$true] %s111
      %117 = dma.vmem_to_hbm [thread:$0]  %s112, 256, %s5, [#allocation5], 128, 128, 8
    $region25: #{tpu_custom_call.1} parent=1 // pred_fallthru
      _
    // Predicated region
    $region26: #{tpu_custom_call.1} parent=1 // pred_check
      _
    $region27: #{tpu_custom_call.1} parent=1 // pred_check_branch
      %119 = sbr.rel (0) target = $region29
    $region28: #{tpu_custom_call.1} parent=1 // pred_region
      %120 = dma.done [#allocation5], 256
    $region29: #{tpu_custom_call.1} parent=1 // pred_fallthru
      _
    %121 = vsyncpa [#allocation5], 1

</llo_original>
